<compile_context>
chip_gen: v7x
topology: tpu7x:2x2x1
jax: 0.10.0
libtpu: 0.0.40
codegen_flags: <defaults>
</compile_context>

<pallas_src>
import functools

import jax
import jax.numpy as jnp
from jax.experimental import pallas as pl
from jax.experimental.pallas import tpu as pltpu


_ROWS_PER_GROUP = 128  # rows folded into the lane axis -> 128*C lanes per group


def _freq_bands(n_freqs: int, logscale: bool):
    """Compile-time Python floats mirroring torch.linspace semantics."""
    if n_freqs <= 0:
        return ()
    if logscale:
        return tuple(float(2.0 ** k) for k in range(n_freqs))
    if n_freqs == 1:
        return (1.0,)
    hi = 2.0 ** (n_freqs - 1)
    step = (hi - 1.0) / (n_freqs - 1)
    return tuple(1.0 + k * step for k in range(n_freqs))


def _embedding_kernel(x_ref, out_ref, *, freqs, width):
    """One grid step.

    x_ref:   (tile_G, width)            width = 128 * in_channels  (lane dense)
    out_ref: (tile_G, (2F+1) * width)   slab-major: [x | sin f0 | cos f0 | ...]
    """
    x_in = x_ref[...]
    # Identity slab (dense, 128-aligned store).
    out_ref[:, 0:width] = x_in
    xf = x_in.astype(jnp.float32)
    for k, f in enumerate(freqs):
        s = xf * f                                  # f is a compile-time float
        base = (1 + 2 * k) * width
        out_ref[:, base:base + width] = jnp.sin(s).astype(out_ref.dtype)
        out_ref[:, base + width:base + 2 * width] = jnp.cos(s).astype(out_ref.dtype)


def _pick_tile_g(n_groups: int, width: int, n_slabs: int, itemsize: int) -> int:
    """Groups (of 128 rows) per grid step.

    Either the full extent (single block) or a multiple of 8 (satisfies the
    (8,128) block rule), sized so double-buffered in+out tiles stay well under
    the scoped-VMEM default on all generations (incl. v7x's smaller VMEM).
    """
    budget = 12 * 1024 * 1024                       # bytes for 2 * (in + out) tiles
    per_group = 2 * width * (1 + n_slabs) * itemsize
    tile = min(128, max(8, budget // per_group))
    if tile >= n_groups:
        return n_groups                             # one block == full extent
    return max(8, (tile // 8) * 8)


def embedding_forward(x, n_freqs: int, logscale: bool = True):
    """Pallas TPU forward of Embedding: (B, C) -> (B, C * (2*n_freqs + 1))."""
    B, C = x.shape
    S = 2 * n_freqs + 1                             # identity + sin/cos per freq
    out_channels = C * S
    freqs = _freq_bands(n_freqs, logscale)

    R = _ROWS_PER_GROUP
    W = R * C                                       # lanes per group (multiple of 128)
    G = pl.cdiv(B, R)                               # number of row groups
    tile_G = _pick_tile_g(G, W, S, x.dtype.itemsize)
    G_pad = pl.cdiv(G, tile_G) * tile_G
    B_pad = G_pad * R

    # Pad the (small) input; padded rows are computed and then sliced away.
    if B_pad != B:
        x = jnp.pad(x, ((0, B_pad - B), (0, 0)))
    x_grouped = x.reshape(G_pad, W)                 # free row-major reshape

    kernel = functools.partial(_embedding_kernel, freqs=freqs, width=W)
    out_slab = pl.pallas_call(
        kernel,
        out_shape=jax.ShapeDtypeStruct((G_pad, S * W), x.dtype),
        grid_spec=pltpu.PrefetchScalarGridSpec(
            num_scalar_prefetch=0,
            grid=(G_pad // tile_G,),
            in_specs=[pl.BlockSpec((tile_G, W), lambda i: (i, 0))],
            out_specs=pl.BlockSpec((tile_G, S * W), lambda i: (i, 0)),
        ),
        compiler_params=pltpu.CompilerParams(
            dimension_semantics=("parallel",),      # megacore sharding on v7x
        ),
    )(x_grouped)

    # Restore the exact torch.cat channel order (pure layout permutation in XLA):
    # out_slab[g, k*W + r*C + c]  ->  out[g*R + r, k*C + c]
    out = jnp.transpose(out_slab.reshape(G_pad, S, R, C), (0, 2, 1, 3))
    out = out.reshape(B_pad, out_channels)
    return out[:B] if B_pad != B else out


def embedding_reference(x, n_freqs: int, logscale: bool = True):
    """Pure-JAX reference mirroring the PyTorch forward."""
    out = [x]
    for f in _freq_bands(n_freqs, logscale):
        out.append(jnp.sin(f * x))
        out.append(jnp.cos(f * x))
    return jnp.concatenate(out, axis=-1)


if __name__ == "__main__":
    key = jax.random.PRNGKey(0)

    # Primary small case (module default: 3 input channels); B not a multiple
    # of 128 exercises the padding path.
    in_channels, n_freqs, B = 3, 4, 20
    x = jax.random.normal(key, (B, in_channels), dtype=jnp.float32)
    out = jax.block_until_ready(embedding_forward(x, n_freqs, logscale=True))
    ref = embedding_reference(x, n_freqs, logscale=True)
    assert out.shape == (B, in_channels * (2 * n_freqs + 1)), out.shape
    assert jnp.allclose(out, ref, atol=1e-5, rtol=1e-5), float(
        jnp.max(jnp.abs(out - ref)))

    # Secondary case exercising the multi-step (pipelined) grid and linear
    # frequency bands.
    B2, n_freqs2 = 9000, 10
    x2 = jax.random.normal(jax.random.PRNGKey(0), (B2, in_channels),
                           dtype=jnp.float32)
    out2 = jax.block_until_ready(embedding_forward(x2, n_freqs2, logscale=False))
    ref2 = embedding_reference(x2, n_freqs2, logscale=False)
    assert out2.shape == (B2, in_channels * (2 * n_freqs2 + 1)), out2.shape
    assert jnp.allclose(out2, ref2, atol=1e-5, rtol=1e-5), float(
        jnp.max(jnp.abs(out2 - ref2)))

    print("KERNEL_OK")
</pallas_src>

<mosaic_0001>
module attributes {stable_mosaic.version = 11 : i64} {
  func.func @_embedding_kernel(%arg0: i32, %arg1: memref<1x384xf32, #tpu.memory_space<vmem>>, %arg2: memref<1x3456xf32, #tpu.memory_space<vmem>>) attributes {dimension_semantics = [#tpu.dimension_semantics<parallel>], iteration_bounds = array<i64: 1>, scalar_prefetch = 0 : i64, scratch_operands = 0 : i64, tpu.core_type = #tpu.core_type<tc>, window_params = [{transform_indices = @transform_0, window_bounds = array<i64: 1, 384>}, {transform_indices = @transform_1, window_bounds = array<i64: 1, 3456>}]} {
    %c0 = arith.constant 0 : index
    %c0_0 = arith.constant 0 : index
    %0 = vector.load %arg1[%c0, %c0_0] : memref<1x384xf32, #tpu.memory_space<vmem>>, vector<1x384xf32>
    %c0_1 = arith.constant 0 : index
    %c0_2 = arith.constant 0 : index
    %1 = vector.load %arg2[%c0_1, %c0_2] : memref<1x3456xf32, #tpu.memory_space<vmem>>, vector<1x384xf32>
    tpu.vector_store %arg2[%c0_1, %c0_2], %0 {strides = array<i32>} : memref<1x3456xf32, #tpu.memory_space<vmem>>, vector<1x384xf32>,
    %cst = arith.constant 1.000000e+00 : f32
    %2 = vector.broadcast %cst : f32 to vector<1x384xf32>
    %3 = arith.mulf %0, %2 : vector<1x384xf32>
    %4 = math.sin %3 : vector<1x384xf32>
    %c0_3 = arith.constant 0 : index
    %c384 = arith.constant 384 : index
    %5 = vector.load %arg2[%c0_3, %c384] : memref<1x3456xf32, #tpu.memory_space<vmem>>, vector<1x384xf32>
    tpu.vector_store %arg2[%c0_3, %c384], %4 {strides = array<i32>} : memref<1x3456xf32, #tpu.memory_space<vmem>>, vector<1x384xf32>,
    %6 = math.cos %3 : vector<1x384xf32>
    %c0_4 = arith.constant 0 : index
    %c768 = arith.constant 768 : index
    %7 = vector.load %arg2[%c0_4, %c768] : memref<1x3456xf32, #tpu.memory_space<vmem>>, vector<1x384xf32>
    tpu.vector_store %arg2[%c0_4, %c768], %6 {strides = array<i32>} : memref<1x3456xf32, #tpu.memory_space<vmem>>, vector<1x384xf32>,
    %cst_5 = arith.constant 2.000000e+00 : f32
    %8 = vector.broadcast %cst_5 : f32 to vector<1x384xf32>
    %9 = arith.mulf %0, %8 : vector<1x384xf32>
    %10 = math.sin %9 : vector<1x384xf32>
    %c0_6 = arith.constant 0 : index
    %c1152 = arith.constant 1152 : index
    %11 = vector.load %arg2[%c0_6, %c1152] : memref<1x3456xf32, #tpu.memory_space<vmem>>, vector<1x384xf32>
    tpu.vector_store %arg2[%c0_6, %c1152], %10 {strides = array<i32>} : memref<1x3456xf32, #tpu.memory_space<vmem>>, vector<1x384xf32>,
    %12 = math.cos %9 : vector<1x384xf32>
    %c0_7 = arith.constant 0 : index
    %c1536 = arith.constant 1536 : index
    %13 = vector.load %arg2[%c0_7, %c1536] : memref<1x3456xf32, #tpu.memory_space<vmem>>, vector<1x384xf32>
    tpu.vector_store %arg2[%c0_7, %c1536], %12 {strides = array<i32>} : memref<1x3456xf32, #tpu.memory_space<vmem>>, vector<1x384xf32>,
    %cst_8 = arith.constant 4.000000e+00 : f32
    %14 = vector.broadcast %cst_8 : f32 to vector<1x384xf32>
    %15 = arith.mulf %0, %14 : vector<1x384xf32>
    %16 = math.sin %15 : vector<1x384xf32>
    %c0_9 = arith.constant 0 : index
    %c1920 = arith.constant 1920 : index
    %17 = vector.load %arg2[%c0_9, %c1920] : memref<1x3456xf32, #tpu.memory_space<vmem>>, vector<1x384xf32>
    tpu.vector_store %arg2[%c0_9, %c1920], %16 {strides = array<i32>} : memref<1x3456xf32, #tpu.memory_space<vmem>>, vector<1x384xf32>,
    %18 = math.cos %15 : vector<1x384xf32>
    %c0_10 = arith.constant 0 : index
    %c2304 = arith.constant 2304 : index
    %19 = vector.load %arg2[%c0_10, %c2304] : memref<1x3456xf32, #tpu.memory_space<vmem>>, vector<1x384xf32>
    tpu.vector_store %arg2[%c0_10, %c2304], %18 {strides = array<i32>} : memref<1x3456xf32, #tpu.memory_space<vmem>>, vector<1x384xf32>,
    %cst_11 = arith.constant 8.000000e+00 : f32
    %20 = vector.broadcast %cst_11 : f32 to vector<1x384xf32>
    %21 = arith.mulf %0, %20 : vector<1x384xf32>
    %22 = math.sin %21 : vector<1x384xf32>
    %c0_12 = arith.constant 0 : index
    %c2688 = arith.constant 2688 : index
    %23 = vector.load %arg2[%c0_12, %c2688] : memref<1x3456xf32, #tpu.memory_space<vmem>>, vector<1x384xf32>
    tpu.vector_store %arg2[%c0_12, %c2688], %22 {strides = array<i32>} : memref<1x3456xf32, #tpu.memory_space<vmem>>, vector<1x384xf32>,
    %24 = math.cos %21 : vector<1x384xf32>
    %c0_13 = arith.constant 0 : index
    %c3072 = arith.constant 3072 : index
    %25 = vector.load %arg2[%c0_13, %c3072] : memref<1x3456xf32, #tpu.memory_space<vmem>>, vector<1x384xf32>
    tpu.vector_store %arg2[%c0_13, %c3072], %24 {strides = array<i32>} : memref<1x3456xf32, #tpu.memory_space<vmem>>, vector<1x384xf32>,
    return
  }
  func.func @transform_0(%arg0: i32) -> (i32, i32) {
    %c0_i32 = arith.constant 0 : i32
    %c0_i32_0 = arith.constant 0 : i32
    return %arg0, %c0_i32 : i32, i32
  }
  func.func @transform_1(%arg0: i32) -> (i32, i32) {
    %c0_i32 = arith.constant 0 : i32
    %c0_i32_0 = arith.constant 0 : i32
    return %arg0, %c0_i32 : i32, i32
  }
}

</mosaic_0001>

<llo_original>
// kernel: tpu_custom_call.1
$region0: #{tpu_custom_call.1}
  #allocation0 [shape = 'u32[]', space=smem, size = 0x4, offset = 0x4, fixed_abs, tag = 'smem constant byte address 0x4 - core index']
  #allocation1 [shape = 'u32[144,128]{1,0:T(1,128)}', space=vmem, size = 0x12000, scoped, tag = 'internal scratch']
  %s0 = inlined_call_operand.hbm [shape: f32[1,384], index: 0, kind: input, shape index: {}]
  %s1 = inlined_call_operand.hbm [shape: f32[1,3456], index: 1, kind: output, shape index: {}]
  %s2 = sld [smem:[#allocation0]]
  $region18: #{tpu_custom_call.1} parent=0
    _
  %s4 = ssub.s32 1, %s2
  %s5 = scalar_select 0, %s4, %s2
  $region1: #{tpu_custom_call.1} parent=0
    #allocation2 [shape = 'u8[1536]{0}', space=vmem, size = 0x800, scoped, tag = 'input window, operand 0, single buffered']
    #allocation3 [shape = 's32[1]{0}', space=sflag, size = 0x4, scoped, tag = 'scoped memory for tpu_custom_call.1']
    #allocation4 [shape = 's32[1]{0}', space=sflag, size = 0x4, scoped, tag = 'scoped memory for tpu_custom_call.1']
    #allocation5 [shape = 'u8[13824]{0}', space=vmem, size = 0x3800, scoped, tag = 'output window, operand 0, single buffered']
    %6 = vsyncpa [#allocation3], 0
    %7 = vsyncpa [#allocation4], 0
    // Predicated region
    $region2: #{tpu_custom_call.1} parent=1 // pred_check
      _
    $region3: #{tpu_custom_call.1} parent=1 // pred_check_branch
      %9 = sbr.rel (0) target = $region5
    $region4: #{tpu_custom_call.1} parent=1 // pred_region
      %s11 = ssub.s32 48, 48
      %12 = vsyncadd [#allocation3], %s11
      %s14 = sshll.u32 [#allocation2], 4
      %s15 = int_to_ptr.vmem [resolvable:$true] %s14
      %17 = dma.hbm_to_vmem [thread:$0]  %s0, 48, %s15, [#allocation3]
    $region5: #{tpu_custom_call.1} parent=1 // pred_fallthru
      _
    // Predicated region
    $region6: #{tpu_custom_call.1} parent=1 // pred_check
      _
    $region7: #{tpu_custom_call.1} parent=1 // pred_check_branch
      %19 = sbr.rel (0) target = $region9
    $region8: #{tpu_custom_call.1} parent=1 // pred_region
      %20 = dma.done [#allocation3], 48
    $region9: #{tpu_custom_call.1} parent=1 // pred_fallthru
      _
    %v21 = vld [vmem:[#allocation2] sm:$0x7]
    %v22 = vlaneseq
    %vm23 = vcmp.ge.s32.totalorder %v22, 0
    %vm24 = vcmp.lt.s32.totalorder %v22, 384
    %vm25 = vmand %vm23, %vm24
    %26 = vst.msk [vmem:[#allocation5] sm:$0x7] %vm25, %v21
    %v27 = vand.u32 2147483647, %v21
    %vm28 = vcmp.le.f32.partialorder %v27, 0.7853982
    %vm29 = vcmp.lt.s32.totalorder %v21, 0
    %v30 = vand.u32 %v21, 2139095040
    %v31 = vshrl.u32 %v30, 23
    %v32 = vsub.s32 %v31, 127
    %v33 = vand.u32 2147483647, %v21
    %v34 = vand.u32 %v33, 8388607
    %v35 = vor.u32 %v34, 8388608
    %v36 = vsub.s32 0, %v35
    %v37 = vadd.s32 %v32, 1
    %vm38 = vcmp.gt.s32.totalorder %v37, 0
    %v39 = vsel %vm38, %v37, 0
    %v40 = vshrl.u32 %v39, 5
    %v41 = vand.u32 %v39, 31
    %v42 = vsub.s32 32, %v41
    %v43 = vshrl.u32 683565275, %v42
    %v44 = vshll.u32 683565275, %v41
    %v45 = vshrl.u32 2475754826, %v42
    %v46 = vor.u32 %v44, %v45
    %v47 = vshll.u32 2475754826, %v41
    %v48 = vshrl.u32 2131351028, %v42
    %v49 = vor.u32 %v47, %v48
    %v50 = vshll.u32 2131351028, %v41
    %v51 = vshrl.u32 2102212464, %v42
    %v52 = vor.u32 %v50, %v51
    %v53 = vshll.u32 2102212464, %v41
    %v54 = vshrl.u32 920167782, %v42
    %v55 = vor.u32 %v53, %v54
    %v56 = vshll.u32 920167782, %v41
    %v57 = vshrl.u32 1326507024, %v42
    %v58 = vor.u32 %v56, %v57
    %vm59 = vcmp.lt.s32.totalorder %v40, 1
    %vm60 = vcmp.lt.s32.totalorder %v40, 2
    %vm61 = vcmp.lt.s32.totalorder %v40, 3
    %vm62 = vcmp.lt.s32.totalorder %v40, 4
    %v63 = vsel %vm59, %v43, %v46
    %v64 = vsel %vm62, %v52, 2102212464
    %v65 = vsel %vm61, %v49, %v64
    %v66 = vsel %vm60, %v63, %v65
    %v67 = vsel %vm59, %v46, %v49
    %v68 = vsel %vm62, %v55, 920167782
    %v69 = vsel %vm61, %v52, %v68
    %v70 = vsel %vm60, %v67, %v69
    %v71 = vsel %vm59, %v49, %v52
    %v72 = vsel %vm62, %v58, 1326507024
    %v73 = vsel %vm61, %v55, %v72
    %v74 = vsel %vm60, %v71, %v73
    %v75 = vshll.u32 %v35, 8
    %v76 = vmul.u32.u64.compose %v75, %v74
    %v77 = vextract.low.u32 %v76
    %v78 = vextract.high.u32 %v76
    %v79 = vmul.u32.u64.compose %v75, %v70
    %v80 = vextract.low.u32 %v79
    %v81 = vextract.high.u32 %v79
    %v82 = vmul.u32 %v75, %v66
    %v83 = vadd.s32 %v78, %v80
    %vm84 = vc.u32 %v78, %v80
    %v85 = vadd.s32 %v81, 1
    %v86 = vsel %vm84, %v85, %v81
    %v87 = vadd.s32 %v82, %v86
    %v88 = vadd.s32 %v87, 536870912
    %v89 = vshrl.u32 %v88, 30
    %v90 = vshll.u32 %v89, 30
    %v91 = vsub.s32 %v87, %v90
    %vm92 = vcmp.lt.s32.totalorder %v91, 0
    %v93 = vsub.s32 0, %v91
    %v94 = vsel %vm92, %v93, %v91
    %v95 = vclz %v94
    %v96 = vsub.s32 %v95, 2
    %vm97 = vcmp.gt.s32.totalorder 0, %v96
    %v98 = vsel %vm97, 0, %v96
    %v99 = vsub.s32 32, %v98
    %v100 = vshll.u32 %v91, %v98
    %v101 = vshrl.u32 %v83, %v99
    %v102 = vor.u32 %v100, %v101
    %v103 = vsub.s32 4294967266, %v98
    %v104 = vadd.s32 %v103, 127
    %v105 = vshll.u32 %v104, 23
    %v106 = vor.u32 4788187, %v105
    %v107 = vand.u32 2147483647, %v106
    %v109 = vcvt.s32.f32 %v102
    %v110 = vmul.f32 %v109, %v107
    %v111 = vxor.u32 %v110, 2147483648
    %v112 = vsel %vm29, %v111, %v110
    %v113 = vsub.s32 4, %v89
    %v114 = vsel %vm29, %v113, %v89
    %v115 = vsel %vm28, %v21, %v112
    %v116 = vsel %vm28, 0, %v114
    %v117 = vcosq.f32.pop %v115
    %v118 = vsinq.f32.pop %v115
    %vm119 = vweird.f32 %v21
    %v120 = vadd.s32 %v116, 3
    %v121 = vand.u32 %v120, 3
    %vm122 = vcmp.lt.s32.totalorder %v121, 2
    %vm123 = vcmp.eq.s32.totalorder %v121, 0
    %v124 = vxor.u32 %v118, 2147483648
    %v125 = vsel %vm123, %v117, %v124
    %vm126 = vcmp.eq.s32.totalorder %v121, 2
    %v127 = vxor.u32 %v117, 2147483648
    %v128 = vsel %vm126, %v127, %v118
    %v129 = vsel %vm122, %v125, %v128
    %v130 = vsel %vm119, nan, %v129
    %131 = vst.msk [vmem:[#allocation5 + $0x3] sm:$0x7] %vm25, %v130
    %v132 = vand.u32 2147483647, %v21
    %vm133 = vcmp.le.f32.partialorder %v132, 0.7853982
    %vm134 = vcmp.lt.s32.totalorder %v21, 0
    %v135 = vand.u32 %v21, 2139095040
    %v136 = vshrl.u32 %v135, 23
    %v137 = vsub.s32 %v136, 127
    %v138 = vand.u32 2147483647, %v21
    %v139 = vand.u32 %v138, 8388607
    %v140 = vor.u32 %v139, 8388608
    %v141 = vsub.s32 0, %v140
    %v142 = vadd.s32 %v137, 1
    %vm143 = vcmp.gt.s32.totalorder %v142, 0
    %v144 = vsel %vm143, %v142, 0
    %v145 = vshrl.u32 %v144, 5
    %v146 = vand.u32 %v144, 31
    %v147 = vsub.s32 32, %v146
    %v148 = vshrl.u32 683565275, %v147
    %v149 = vshll.u32 683565275, %v146
    %v150 = vshrl.u32 2475754826, %v147
    %v151 = vor.u32 %v149, %v150
    %v152 = vshll.u32 2475754826, %v146
    %v153 = vshrl.u32 2131351028, %v147
    %v154 = vor.u32 %v152, %v153
    %v155 = vshll.u32 2131351028, %v146
    %v156 = vshrl.u32 2102212464, %v147
    %v157 = vor.u32 %v155, %v156
    %v158 = vshll.u32 2102212464, %v146
    %v159 = vshrl.u32 920167782, %v147
    %v160 = vor.u32 %v158, %v159
    %v161 = vshll.u32 920167782, %v146
    %v162 = vshrl.u32 1326507024, %v147
    %v163 = vor.u32 %v161, %v162
    %vm164 = vcmp.lt.s32.totalorder %v145, 1
    %vm165 = vcmp.lt.s32.totalorder %v145, 2
    %vm166 = vcmp.lt.s32.totalorder %v145, 3
    %vm167 = vcmp.lt.s32.totalorder %v145, 4
    %v168 = vsel %vm164, %v148, %v151
    %v169 = vsel %vm167, %v157, 2102212464
    %v170 = vsel %vm166, %v154, %v169
    %v171 = vsel %vm165, %v168, %v170
    %v172 = vsel %vm164, %v151, %v154
    %v173 = vsel %vm167, %v160, 920167782
    %v174 = vsel %vm166, %v157, %v173
    %v175 = vsel %vm165, %v172, %v174
    %v176 = vsel %vm164, %v154, %v157
    %v177 = vsel %vm167, %v163, 1326507024
    %v178 = vsel %vm166, %v160, %v177
    %v179 = vsel %vm165, %v176, %v178
    %v180 = vshll.u32 %v140, 8
    %v181 = vmul.u32.u64.compose %v180, %v179
    %v182 = vextract.low.u32 %v181
    %v183 = vextract.high.u32 %v181
    %v184 = vmul.u32.u64.compose %v180, %v175
    %v185 = vextract.low.u32 %v184
    %v186 = vextract.high.u32 %v184
    %v187 = vmul.u32 %v180, %v171
    %v188 = vadd.s32 %v183, %v185
    %vm189 = vc.u32 %v183, %v185
    %v190 = vadd.s32 %v186, 1
    %v191 = vsel %vm189, %v190, %v186
    %v192 = vadd.s32 %v187, %v191
    %v193 = vadd.s32 %v192, 536870912
    %v194 = vshrl.u32 %v193, 30
    %v195 = vshll.u32 %v194, 30
    %v196 = vsub.s32 %v192, %v195
    %vm197 = vcmp.lt.s32.totalorder %v196, 0
    %v198 = vsub.s32 0, %v196
    %v199 = vsel %vm197, %v198, %v196
    %v200 = vclz %v199
    %v201 = vsub.s32 %v200, 2
    %vm202 = vcmp.gt.s32.totalorder 0, %v201
    %v203 = vsel %vm202, 0, %v201
    %v204 = vsub.s32 32, %v203
    %v205 = vshll.u32 %v196, %v203
    %v206 = vshrl.u32 %v188, %v204
    %v207 = vor.u32 %v205, %v206
    %v208 = vsub.s32 4294967266, %v203
    %v209 = vadd.s32 %v208, 127
    %v210 = vshll.u32 %v209, 23
    %v211 = vor.u32 4788187, %v210
    %v212 = vand.u32 2147483647, %v211
    %v214 = vcvt.s32.f32 %v207
    %v215 = vmul.f32 %v214, %v212
    %v216 = vxor.u32 %v215, 2147483648
    %v217 = vsel %vm134, %v216, %v215
    %v218 = vsub.s32 4, %v194
    %v219 = vsel %vm134, %v218, %v194
    %v220 = vsel %vm133, %v21, %v217
    %v221 = vsel %vm133, 0, %v219
    %v222 = vcosq.f32.pop %v220
    %v223 = vsinq.f32.pop %v220
    %vm224 = vweird.f32 %v21
    %v225 = vand.u32 %v221, 3
    %vm226 = vcmp.lt.s32.totalorder %v225, 2
    %vm227 = vcmp.eq.s32.totalorder %v225, 0
    %v228 = vxor.u32 %v223, 2147483648
    %v229 = vsel %vm227, %v222, %v228
    %vm230 = vcmp.eq.s32.totalorder %v225, 2
    %v231 = vxor.u32 %v222, 2147483648
    %v232 = vsel %vm230, %v231, %v223
    %v233 = vsel %vm226, %v229, %v232
    %v234 = vsel %vm224, nan, %v233
    %235 = vst.msk [vmem:[#allocation5 + $0x6] sm:$0x7] %vm25, %v234
    %v236 = vmul.f32 %v21, 2.0
    %v237 = vand.u32 2147483647, %v236
    %vm238 = vcmp.le.f32.partialorder %v237, 0.7853982
    %vm239 = vcmp.lt.s32.totalorder %v236, 0
    %v240 = vand.u32 %v236, 2139095040
    %v241 = vshrl.u32 %v240, 23
    %v242 = vsub.s32 %v241, 127
    %v243 = vand.u32 2147483647, %v236
    %v244 = vand.u32 %v243, 8388607
    %v245 = vor.u32 %v244, 8388608
    %v246 = vsub.s32 0, %v245
    %v247 = vadd.s32 %v242, 1
    %vm248 = vcmp.gt.s32.totalorder %v247, 0
    %v249 = vsel %vm248, %v247, 0
    %v250 = vshrl.u32 %v249, 5
    %v251 = vand.u32 %v249, 31
    %v252 = vsub.s32 32, %v251
    %v253 = vshrl.u32 683565275, %v252
    %v254 = vshll.u32 683565275, %v251
    %v255 = vshrl.u32 2475754826, %v252
    %v256 = vor.u32 %v254, %v255
    %v257 = vshll.u32 2475754826, %v251
    %v258 = vshrl.u32 2131351028, %v252
    %v259 = vor.u32 %v257, %v258
    %v260 = vshll.u32 2131351028, %v251
    %v261 = vshrl.u32 2102212464, %v252
    %v262 = vor.u32 %v260, %v261
    %v263 = vshll.u32 2102212464, %v251
    %v264 = vshrl.u32 920167782, %v252
    %v265 = vor.u32 %v263, %v264
    %v266 = vshll.u32 920167782, %v251
    %v267 = vshrl.u32 1326507024, %v252
    %v268 = vor.u32 %v266, %v267
    %vm269 = vcmp.lt.s32.totalorder %v250, 1
    %vm270 = vcmp.lt.s32.totalorder %v250, 2
    %vm271 = vcmp.lt.s32.totalorder %v250, 3
    %vm272 = vcmp.lt.s32.totalorder %v250, 4
    %v273 = vsel %vm269, %v253, %v256
    %v274 = vsel %vm272, %v262, 2102212464
    %v275 = vsel %vm271, %v259, %v274
    %v276 = vsel %vm270, %v273, %v275
    %v277 = vsel %vm269, %v256, %v259
    %v278 = vsel %vm272, %v265, 920167782
    %v279 = vsel %vm271, %v262, %v278
    %v280 = vsel %vm270, %v277, %v279
    %v281 = vsel %vm269, %v259, %v262
    %v282 = vsel %vm272, %v268, 1326507024
    %v283 = vsel %vm271, %v265, %v282
    %v284 = vsel %vm270, %v281, %v283
    %v285 = vshll.u32 %v245, 8
    %v286 = vmul.u32.u64.compose %v285, %v284
    %v287 = vextract.low.u32 %v286
    %v288 = vextract.high.u32 %v286
    %v289 = vmul.u32.u64.compose %v285, %v280
    %v290 = vextract.low.u32 %v289
    %v291 = vextract.high.u32 %v289
    %v292 = vmul.u32 %v285, %v276
    %v293 = vadd.s32 %v288, %v290
    %vm294 = vc.u32 %v288, %v290
    %v295 = vadd.s32 %v291, 1
    %v296 = vsel %vm294, %v295, %v291
    %v297 = vadd.s32 %v292, %v296
    %v298 = vadd.s32 %v297, 536870912
    %v299 = vshrl.u32 %v298, 30
    %v300 = vshll.u32 %v299, 30
    %v301 = vsub.s32 %v297, %v300
    %vm302 = vcmp.lt.s32.totalorder %v301, 0
    %v303 = vsub.s32 0, %v301
    %v304 = vsel %vm302, %v303, %v301
    %v305 = vclz %v304
    %v306 = vsub.s32 %v305, 2
    %vm307 = vcmp.gt.s32.totalorder 0, %v306
    %v308 = vsel %vm307, 0, %v306
    %v309 = vsub.s32 32, %v308
    %v310 = vshll.u32 %v301, %v308
    %v311 = vshrl.u32 %v293, %v309
    %v312 = vor.u32 %v310, %v311
    %v313 = vsub.s32 4294967266, %v308
    %v314 = vadd.s32 %v313, 127
    %v315 = vshll.u32 %v314, 23
    %v316 = vor.u32 4788187, %v315
    %v317 = vand.u32 2147483647, %v316
    %v319 = vcvt.s32.f32 %v312
    %v320 = vmul.f32 %v319, %v317
    %v321 = vxor.u32 %v320, 2147483648
    %v322 = vsel %vm239, %v321, %v320
    %v323 = vsub.s32 4, %v299
    %v324 = vsel %vm239, %v323, %v299
    %v325 = vsel %vm238, %v236, %v322
    %v326 = vsel %vm238, 0, %v324
    %v327 = vcosq.f32.pop %v325
    %v328 = vsinq.f32.pop %v325
    %vm329 = vweird.f32 %v236
    %v330 = vadd.s32 %v326, 3
    %v331 = vand.u32 %v330, 3
    %vm332 = vcmp.lt.s32.totalorder %v331, 2
    %vm333 = vcmp.eq.s32.totalorder %v331, 0
    %v334 = vxor.u32 %v328, 2147483648
    %v335 = vsel %vm333, %v327, %v334
    %vm336 = vcmp.eq.s32.totalorder %v331, 2
    %v337 = vxor.u32 %v327, 2147483648
    %v338 = vsel %vm336, %v337, %v328
    %v339 = vsel %vm332, %v335, %v338
    %v340 = vsel %vm329, nan, %v339
    %341 = vst.msk [vmem:[#allocation5 + $0x9] sm:$0x7] %vm25, %v340
    %v342 = vand.u32 2147483647, %v236
    %vm343 = vcmp.le.f32.partialorder %v342, 0.7853982
    %vm344 = vcmp.lt.s32.totalorder %v236, 0
    %v345 = vand.u32 %v236, 2139095040
    %v346 = vshrl.u32 %v345, 23
    %v347 = vsub.s32 %v346, 127
    %v348 = vand.u32 2147483647, %v236
    %v349 = vand.u32 %v348, 8388607
    %v350 = vor.u32 %v349, 8388608
    %v351 = vsub.s32 0, %v350
    %v352 = vadd.s32 %v347, 1
    %vm353 = vcmp.gt.s32.totalorder %v352, 0
    %v354 = vsel %vm353, %v352, 0
    %v355 = vshrl.u32 %v354, 5
    %v356 = vand.u32 %v354, 31
    %v357 = vsub.s32 32, %v356
    %v358 = vshrl.u32 683565275, %v357
    %v359 = vshll.u32 683565275, %v356
    %v360 = vshrl.u32 2475754826, %v357
    %v361 = vor.u32 %v359, %v360
    %v362 = vshll.u32 2475754826, %v356
    %v363 = vshrl.u32 2131351028, %v357
    %v364 = vor.u32 %v362, %v363
    %v365 = vshll.u32 2131351028, %v356
    %v366 = vshrl.u32 2102212464, %v357
    %v367 = vor.u32 %v365, %v366
    %v368 = vshll.u32 2102212464, %v356
    %v369 = vshrl.u32 920167782, %v357
    %v370 = vor.u32 %v368, %v369
    %v371 = vshll.u32 920167782, %v356
    %v372 = vshrl.u32 1326507024, %v357
    %v373 = vor.u32 %v371, %v372
    %vm374 = vcmp.lt.s32.totalorder %v355, 1
    %vm375 = vcmp.lt.s32.totalorder %v355, 2
    %vm376 = vcmp.lt.s32.totalorder %v355, 3
    %vm377 = vcmp.lt.s32.totalorder %v355, 4
    %v378 = vsel %vm374, %v358, %v361
    %v379 = vsel %vm377, %v367, 2102212464
    %v380 = vsel %vm376, %v364, %v379
    %v381 = vsel %vm375, %v378, %v380
    %v382 = vsel %vm374, %v361, %v364
    %v383 = vsel %vm377, %v370, 920167782
    %v384 = vsel %vm376, %v367, %v383
    %v385 = vsel %vm375, %v382, %v384
    %v386 = vsel %vm374, %v364, %v367
    %v387 = vsel %vm377, %v373, 1326507024
    %v388 = vsel %vm376, %v370, %v387
    %v389 = vsel %vm375, %v386, %v388
    %v390 = vshll.u32 %v350, 8
    %v391 = vmul.u32.u64.compose %v390, %v389
    %v392 = vextract.low.u32 %v391
    %v393 = vextract.high.u32 %v391
    %v394 = vmul.u32.u64.compose %v390, %v385
    %v395 = vextract.low.u32 %v394
    %v396 = vextract.high.u32 %v394
    %v397 = vmul.u32 %v390, %v381
    %v398 = vadd.s32 %v393, %v395
    %vm399 = vc.u32 %v393, %v395
    %v400 = vadd.s32 %v396, 1
    %v401 = vsel %vm399, %v400, %v396
    %v402 = vadd.s32 %v397, %v401
    %v403 = vadd.s32 %v402, 536870912
    %v404 = vshrl.u32 %v403, 30
    %v405 = vshll.u32 %v404, 30
    %v406 = vsub.s32 %v402, %v405
    %vm407 = vcmp.lt.s32.totalorder %v406, 0
    %v408 = vsub.s32 0, %v406
    %v409 = vsel %vm407, %v408, %v406
    %v410 = vclz %v409
    %v411 = vsub.s32 %v410, 2
    %vm412 = vcmp.gt.s32.totalorder 0, %v411
    %v413 = vsel %vm412, 0, %v411
    %v414 = vsub.s32 32, %v413
    %v415 = vshll.u32 %v406, %v413
    %v416 = vshrl.u32 %v398, %v414
    %v417 = vor.u32 %v415, %v416
    %v418 = vsub.s32 4294967266, %v413
    %v419 = vadd.s32 %v418, 127
    %v420 = vshll.u32 %v419, 23
    %v421 = vor.u32 4788187, %v420
    %v422 = vand.u32 2147483647, %v421
    %v424 = vcvt.s32.f32 %v417
    %v425 = vmul.f32 %v424, %v422
    %v426 = vxor.u32 %v425, 2147483648
    %v427 = vsel %vm344, %v426, %v425
    %v428 = vsub.s32 4, %v404
    %v429 = vsel %vm344, %v428, %v404
    %v430 = vsel %vm343, %v236, %v427
    %v431 = vsel %vm343, 0, %v429
    %v432 = vcosq.f32.pop %v430
    %v433 = vsinq.f32.pop %v430
    %vm434 = vweird.f32 %v236
    %v435 = vand.u32 %v431, 3
    %vm436 = vcmp.lt.s32.totalorder %v435, 2
    %vm437 = vcmp.eq.s32.totalorder %v435, 0
    %v438 = vxor.u32 %v433, 2147483648
    %v439 = vsel %vm437, %v432, %v438
    %vm440 = vcmp.eq.s32.totalorder %v435, 2
    %v441 = vxor.u32 %v432, 2147483648
    %v442 = vsel %vm440, %v441, %v433
    %v443 = vsel %vm436, %v439, %v442
    %v444 = vsel %vm434, nan, %v443
    %445 = vst.msk [vmem:[#allocation5 + $0xc] sm:$0x7] %vm25, %v444
    %v446 = vmul.f32 %v21, 4.0
    %v447 = vand.u32 2147483647, %v446
    %vm448 = vcmp.le.f32.partialorder %v447, 0.7853982
    %vm449 = vcmp.lt.s32.totalorder %v446, 0
    %v450 = vand.u32 %v446, 2139095040
    %v451 = vshrl.u32 %v450, 23
    %v452 = vsub.s32 %v451, 127
    %v453 = vand.u32 2147483647, %v446
    %v454 = vand.u32 %v453, 8388607
    %v455 = vor.u32 %v454, 8388608
    %v456 = vsub.s32 0, %v455
    %v457 = vadd.s32 %v452, 1
    %vm458 = vcmp.gt.s32.totalorder %v457, 0
    %v459 = vsel %vm458, %v457, 0
    %v460 = vshrl.u32 %v459, 5
    %v461 = vand.u32 %v459, 31
    %v462 = vsub.s32 32, %v461
    %v463 = vshrl.u32 683565275, %v462
    %v464 = vshll.u32 683565275, %v461
    %v465 = vshrl.u32 2475754826, %v462
    %v466 = vor.u32 %v464, %v465
    %v467 = vshll.u32 2475754826, %v461
    %v468 = vshrl.u32 2131351028, %v462
    %v469 = vor.u32 %v467, %v468
    %v470 = vshll.u32 2131351028, %v461
    %v471 = vshrl.u32 2102212464, %v462
    %v472 = vor.u32 %v470, %v471
    %v473 = vshll.u32 2102212464, %v461
    %v474 = vshrl.u32 920167782, %v462
    %v475 = vor.u32 %v473, %v474
    %v476 = vshll.u32 920167782, %v461
    %v477 = vshrl.u32 1326507024, %v462
    %v478 = vor.u32 %v476, %v477
    %vm479 = vcmp.lt.s32.totalorder %v460, 1
    %vm480 = vcmp.lt.s32.totalorder %v460, 2
    %vm481 = vcmp.lt.s32.totalorder %v460, 3
    %vm482 = vcmp.lt.s32.totalorder %v460, 4
    %v483 = vsel %vm479, %v463, %v466
    %v484 = vsel %vm482, %v472, 2102212464
    %v485 = vsel %vm481, %v469, %v484
    %v486 = vsel %vm480, %v483, %v485
    %v487 = vsel %vm479, %v466, %v469
    %v488 = vsel %vm482, %v475, 920167782
    %v489 = vsel %vm481, %v472, %v488
    %v490 = vsel %vm480, %v487, %v489
    %v491 = vsel %vm479, %v469, %v472
    %v492 = vsel %vm482, %v478, 1326507024
    %v493 = vsel %vm481, %v475, %v492
    %v494 = vsel %vm480, %v491, %v493
    %v495 = vshll.u32 %v455, 8
    %v496 = vmul.u32.u64.compose %v495, %v494
    %v497 = vextract.low.u32 %v496
    %v498 = vextract.high.u32 %v496
    %v499 = vmul.u32.u64.compose %v495, %v490
    %v500 = vextract.low.u32 %v499
    %v501 = vextract.high.u32 %v499
    %v502 = vmul.u32 %v495, %v486
    %v503 = vadd.s32 %v498, %v500
    %vm504 = vc.u32 %v498, %v500
    %v505 = vadd.s32 %v501, 1
    %v506 = vsel %vm504, %v505, %v501
    %v507 = vadd.s32 %v502, %v506
    %v508 = vadd.s32 %v507, 536870912
    %v509 = vshrl.u32 %v508, 30
    %v510 = vshll.u32 %v509, 30
    %v511 = vsub.s32 %v507, %v510
    %vm512 = vcmp.lt.s32.totalorder %v511, 0
    %v513 = vsub.s32 0, %v511
    %v514 = vsel %vm512, %v513, %v511
    %v515 = vclz %v514
    %v516 = vsub.s32 %v515, 2
    %vm517 = vcmp.gt.s32.totalorder 0, %v516
    %v518 = vsel %vm517, 0, %v516
    %v519 = vsub.s32 32, %v518
    %v520 = vshll.u32 %v511, %v518
    %v521 = vshrl.u32 %v503, %v519
    %v522 = vor.u32 %v520, %v521
    %v523 = vsub.s32 4294967266, %v518
    %v524 = vadd.s32 %v523, 127
    %v525 = vshll.u32 %v524, 23
    %v526 = vor.u32 4788187, %v525
    %v527 = vand.u32 2147483647, %v526
    %v529 = vcvt.s32.f32 %v522
    %v530 = vmul.f32 %v529, %v527
    %v531 = vxor.u32 %v530, 2147483648
    %v532 = vsel %vm449, %v531, %v530
    %v533 = vsub.s32 4, %v509
    %v534 = vsel %vm449, %v533, %v509
    %v535 = vsel %vm448, %v446, %v532
    %v536 = vsel %vm448, 0, %v534
    %v537 = vcosq.f32.pop %v535
    %v538 = vsinq.f32.pop %v535
    %vm539 = vweird.f32 %v446
    %v540 = vadd.s32 %v536, 3
    %v541 = vand.u32 %v540, 3
    %vm542 = vcmp.lt.s32.totalorder %v541, 2
    %vm543 = vcmp.eq.s32.totalorder %v541, 0
    %v544 = vxor.u32 %v538, 2147483648
    %v545 = vsel %vm543, %v537, %v544
    %vm546 = vcmp.eq.s32.totalorder %v541, 2
    %v547 = vxor.u32 %v537, 2147483648
    %v548 = vsel %vm546, %v547, %v538
    %v549 = vsel %vm542, %v545, %v548
    %v550 = vsel %vm539, nan, %v549
    %551 = vst.msk [vmem:[#allocation5 + $0xf] sm:$0x7] %vm25, %v550
    %v552 = vand.u32 2147483647, %v446
    %vm553 = vcmp.le.f32.partialorder %v552, 0.7853982
    %vm554 = vcmp.lt.s32.totalorder %v446, 0
    %v555 = vand.u32 %v446, 2139095040
    %v556 = vshrl.u32 %v555, 23
    %v557 = vsub.s32 %v556, 127
    %v558 = vand.u32 2147483647, %v446
    %v559 = vand.u32 %v558, 8388607
    %v560 = vor.u32 %v559, 8388608
    %v561 = vsub.s32 0, %v560
    %v562 = vadd.s32 %v557, 1
    %vm563 = vcmp.gt.s32.totalorder %v562, 0
    %v564 = vsel %vm563, %v562, 0
    %v565 = vshrl.u32 %v564, 5
    %v566 = vand.u32 %v564, 31
    %v567 = vsub.s32 32, %v566
    %v568 = vshrl.u32 683565275, %v567
    %v569 = vshll.u32 683565275, %v566
    %v570 = vshrl.u32 2475754826, %v567
    %v571 = vor.u32 %v569, %v570
    %v572 = vshll.u32 2475754826, %v566
    %v573 = vshrl.u32 2131351028, %v567
    %v574 = vor.u32 %v572, %v573
    %v575 = vshll.u32 2131351028, %v566
    %v576 = vshrl.u32 2102212464, %v567
    %v577 = vor.u32 %v575, %v576
    %v578 = vshll.u32 2102212464, %v566
    %v579 = vshrl.u32 920167782, %v567
    %v580 = vor.u32 %v578, %v579
    %v581 = vshll.u32 920167782, %v566
    %v582 = vshrl.u32 1326507024, %v567
    %v583 = vor.u32 %v581, %v582
    %vm584 = vcmp.lt.s32.totalorder %v565, 1
    %vm585 = vcmp.lt.s32.totalorder %v565, 2
    %vm586 = vcmp.lt.s32.totalorder %v565, 3
    %vm587 = vcmp.lt.s32.totalorder %v565, 4
    %v588 = vsel %vm584, %v568, %v571
    %v589 = vsel %vm587, %v577, 2102212464
    %v590 = vsel %vm586, %v574, %v589
    %v591 = vsel %vm585, %v588, %v590
    %v592 = vsel %vm584, %v571, %v574
    %v593 = vsel %vm587, %v580, 920167782
    %v594 = vsel %vm586, %v577, %v593
    %v595 = vsel %vm585, %v592, %v594
    %v596 = vsel %vm584, %v574, %v577
    %v597 = vsel %vm587, %v583, 1326507024
    %v598 = vsel %vm586, %v580, %v597
    %v599 = vsel %vm585, %v596, %v598
    %v600 = vshll.u32 %v560, 8
    %v601 = vmul.u32.u64.compose %v600, %v599
    %v602 = vextract.low.u32 %v601
    %v603 = vextract.high.u32 %v601
    %v604 = vmul.u32.u64.compose %v600, %v595
    %v605 = vextract.low.u32 %v604
    %v606 = vextract.high.u32 %v604
    %v607 = vmul.u32 %v600, %v591
    %v608 = vadd.s32 %v603, %v605
    %vm609 = vc.u32 %v603, %v605
    %v610 = vadd.s32 %v606, 1
    %v611 = vsel %vm609, %v610, %v606
    %v612 = vadd.s32 %v607, %v611
    %v613 = vadd.s32 %v612, 536870912
    %v614 = vshrl.u32 %v613, 30
    %v615 = vshll.u32 %v614, 30
    %v616 = vsub.s32 %v612, %v615
    %vm617 = vcmp.lt.s32.totalorder %v616, 0
    %v618 = vsub.s32 0, %v616
    %v619 = vsel %vm617, %v618, %v616
    %v620 = vclz %v619
    %v621 = vsub.s32 %v620, 2
    %vm622 = vcmp.gt.s32.totalorder 0, %v621
    %v623 = vsel %vm622, 0, %v621
    %v624 = vsub.s32 32, %v623
    %v625 = vshll.u32 %v616, %v623
    %v626 = vshrl.u32 %v608, %v624
    %v627 = vor.u32 %v625, %v626
    %v628 = vsub.s32 4294967266, %v623
    %v629 = vadd.s32 %v628, 127
    %v630 = vshll.u32 %v629, 23
    %v631 = vor.u32 4788187, %v630
    %v632 = vand.u32 2147483647, %v631
    %v634 = vcvt.s32.f32 %v627
    %v635 = vmul.f32 %v634, %v632
    %v636 = vxor.u32 %v635, 2147483648
    %v637 = vsel %vm554, %v636, %v635
    %v638 = vsub.s32 4, %v614
    %v639 = vsel %vm554, %v638, %v614
    %v640 = vsel %vm553, %v446, %v637
    %v641 = vsel %vm553, 0, %v639
    %v642 = vcosq.f32.pop %v640
    %v643 = vsinq.f32.pop %v640
    %vm644 = vweird.f32 %v446
    %v645 = vand.u32 %v641, 3
    %vm646 = vcmp.lt.s32.totalorder %v645, 2
    %vm647 = vcmp.eq.s32.totalorder %v645, 0
    %v648 = vxor.u32 %v643, 2147483648
    %v649 = vsel %vm647, %v642, %v648
    %vm650 = vcmp.eq.s32.totalorder %v645, 2
    %v651 = vxor.u32 %v642, 2147483648
    %v652 = vsel %vm650, %v651, %v643
    %v653 = vsel %vm646, %v649, %v652
    %v654 = vsel %vm644, nan, %v653
    %655 = vst.msk [vmem:[#allocation5 + $0x12] sm:$0x7] %vm25, %v654
    %v656 = vmul.f32 %v21, 8.0
    %v657 = vand.u32 2147483647, %v656
    %vm658 = vcmp.le.f32.partialorder %v657, 0.7853982
    %vm659 = vcmp.lt.s32.totalorder %v656, 0
    %v660 = vand.u32 %v656, 2139095040
    %v661 = vshrl.u32 %v660, 23
    %v662 = vsub.s32 %v661, 127
    %v663 = vand.u32 2147483647, %v656
    %v664 = vand.u32 %v663, 8388607
    %v665 = vor.u32 %v664, 8388608
    %v666 = vsub.s32 0, %v665
    %v667 = vadd.s32 %v662, 1
    %vm668 = vcmp.gt.s32.totalorder %v667, 0
    %v669 = vsel %vm668, %v667, 0
    %v670 = vshrl.u32 %v669, 5
    %v671 = vand.u32 %v669, 31
    %v672 = vsub.s32 32, %v671
    %v673 = vshrl.u32 683565275, %v672
    %v674 = vshll.u32 683565275, %v671
    %v675 = vshrl.u32 2475754826, %v672
    %v676 = vor.u32 %v674, %v675
    %v677 = vshll.u32 2475754826, %v671
    %v678 = vshrl.u32 2131351028, %v672
    %v679 = vor.u32 %v677, %v678
    %v680 = vshll.u32 2131351028, %v671
    %v681 = vshrl.u32 2102212464, %v672
    %v682 = vor.u32 %v680, %v681
    %v683 = vshll.u32 2102212464, %v671
    %v684 = vshrl.u32 920167782, %v672
    %v685 = vor.u32 %v683, %v684
    %v686 = vshll.u32 920167782, %v671
    %v687 = vshrl.u32 1326507024, %v672
    %v688 = vor.u32 %v686, %v687
    %vm689 = vcmp.lt.s32.totalorder %v670, 1
    %vm690 = vcmp.lt.s32.totalorder %v670, 2
    %vm691 = vcmp.lt.s32.totalorder %v670, 3
    %vm692 = vcmp.lt.s32.totalorder %v670, 4
    %v693 = vsel %vm689, %v673, %v676
    %v694 = vsel %vm692, %v682, 2102212464
    %v695 = vsel %vm691, %v679, %v694
    %v696 = vsel %vm690, %v693, %v695
    %v697 = vsel %vm689, %v676, %v679
    %v698 = vsel %vm692, %v685, 920167782
    %v699 = vsel %vm691, %v682, %v698
    %v700 = vsel %vm690, %v697, %v699
    %v701 = vsel %vm689, %v679, %v682
    %v702 = vsel %vm692, %v688, 1326507024
    %v703 = vsel %vm691, %v685, %v702
    %v704 = vsel %vm690, %v701, %v703
    %v705 = vshll.u32 %v665, 8
    %v706 = vmul.u32.u64.compose %v705, %v704
    %v707 = vextract.low.u32 %v706
    %v708 = vextract.high.u32 %v706
    %v709 = vmul.u32.u64.compose %v705, %v700
    %v710 = vextract.low.u32 %v709
    %v711 = vextract.high.u32 %v709
    %v712 = vmul.u32 %v705, %v696
    %v713 = vadd.s32 %v708, %v710
    %vm714 = vc.u32 %v708, %v710
    %v715 = vadd.s32 %v711, 1
    %v716 = vsel %vm714, %v715, %v711
    %v717 = vadd.s32 %v712, %v716
    %v718 = vadd.s32 %v717, 536870912
    %v719 = vshrl.u32 %v718, 30
    %v720 = vshll.u32 %v719, 30
    %v721 = vsub.s32 %v717, %v720
    %vm722 = vcmp.lt.s32.totalorder %v721, 0
    %v723 = vsub.s32 0, %v721
    %v724 = vsel %vm722, %v723, %v721
    %v725 = vclz %v724
    %v726 = vsub.s32 %v725, 2
    %vm727 = vcmp.gt.s32.totalorder 0, %v726
    %v728 = vsel %vm727, 0, %v726
    %v729 = vsub.s32 32, %v728
    %v730 = vshll.u32 %v721, %v728
    %v731 = vshrl.u32 %v713, %v729
    %v732 = vor.u32 %v730, %v731
    %v733 = vsub.s32 4294967266, %v728
    %v734 = vadd.s32 %v733, 127
    %v735 = vshll.u32 %v734, 23
    %v736 = vor.u32 4788187, %v735
    %v737 = vand.u32 2147483647, %v736
    %v739 = vcvt.s32.f32 %v732
    %v740 = vmul.f32 %v739, %v737
    %v741 = vxor.u32 %v740, 2147483648
    %v742 = vsel %vm659, %v741, %v740
    %v743 = vsub.s32 4, %v719
    %v744 = vsel %vm659, %v743, %v719
    %v745 = vsel %vm658, %v656, %v742
    %v746 = vsel %vm658, 0, %v744
    %v747 = vcosq.f32.pop %v745
    %v748 = vsinq.f32.pop %v745
    %vm749 = vweird.f32 %v656
    %v750 = vadd.s32 %v746, 3
    %v751 = vand.u32 %v750, 3
    %vm752 = vcmp.lt.s32.totalorder %v751, 2
    %vm753 = vcmp.eq.s32.totalorder %v751, 0
    %v754 = vxor.u32 %v748, 2147483648
    %v755 = vsel %vm753, %v747, %v754
    %vm756 = vcmp.eq.s32.totalorder %v751, 2
    %v757 = vxor.u32 %v747, 2147483648
    %v758 = vsel %vm756, %v757, %v748
    %v759 = vsel %vm752, %v755, %v758
    %v760 = vsel %vm749, nan, %v759
    %761 = vst.msk [vmem:[#allocation5 + $0x15] sm:$0x7] %vm25, %v760
    %v762 = vand.u32 2147483647, %v656
    %vm763 = vcmp.le.f32.partialorder %v762, 0.7853982
    %vm764 = vcmp.lt.s32.totalorder %v656, 0
    %v765 = vand.u32 %v656, 2139095040
    %v766 = vshrl.u32 %v765, 23
    %v767 = vsub.s32 %v766, 127
    %v768 = vand.u32 2147483647, %v656
    %v769 = vand.u32 %v768, 8388607
    %v770 = vor.u32 %v769, 8388608
    %v771 = vsub.s32 0, %v770
    %v772 = vadd.s32 %v767, 1
    %vm773 = vcmp.gt.s32.totalorder %v772, 0
    %v774 = vsel %vm773, %v772, 0
    %v775 = vshrl.u32 %v774, 5
    %v776 = vand.u32 %v774, 31
    %v777 = vsub.s32 32, %v776
    %v778 = vshrl.u32 683565275, %v777
    %v779 = vshll.u32 683565275, %v776
    %v780 = vshrl.u32 2475754826, %v777
    %v781 = vor.u32 %v779, %v780
    %v782 = vshll.u32 2475754826, %v776
    %v783 = vshrl.u32 2131351028, %v777
    %v784 = vor.u32 %v782, %v783
    %v785 = vshll.u32 2131351028, %v776
    %v786 = vshrl.u32 2102212464, %v777
    %v787 = vor.u32 %v785, %v786
    %v788 = vshll.u32 2102212464, %v776
    %v789 = vshrl.u32 920167782, %v777
    %v790 = vor.u32 %v788, %v789
    %v791 = vshll.u32 920167782, %v776
    %v792 = vshrl.u32 1326507024, %v777
    %v793 = vor.u32 %v791, %v792
    %vm794 = vcmp.lt.s32.totalorder %v775, 1
    %vm795 = vcmp.lt.s32.totalorder %v775, 2
    %vm796 = vcmp.lt.s32.totalorder %v775, 3
    %vm797 = vcmp.lt.s32.totalorder %v775, 4
    %v798 = vsel %vm794, %v778, %v781
    %v799 = vsel %vm797, %v787, 2102212464
    %v800 = vsel %vm796, %v784, %v799
    %v801 = vsel %vm795, %v798, %v800
    %v802 = vsel %vm794, %v781, %v784
    %v803 = vsel %vm797, %v790, 920167782
    %v804 = vsel %vm796, %v787, %v803
    %v805 = vsel %vm795, %v802, %v804
    %v806 = vsel %vm794, %v784, %v787
    %v807 = vsel %vm797, %v793, 1326507024
    %v808 = vsel %vm796, %v790, %v807
    %v809 = vsel %vm795, %v806, %v808
    %v810 = vshll.u32 %v770, 8
    %v811 = vmul.u32.u64.compose %v810, %v809
    %v812 = vextract.low.u32 %v811
    %v813 = vextract.high.u32 %v811
    %v814 = vmul.u32.u64.compose %v810, %v805
    %v815 = vextract.low.u32 %v814
    %v816 = vextract.high.u32 %v814
    %v817 = vmul.u32 %v810, %v801
    %v818 = vadd.s32 %v813, %v815
    %vm819 = vc.u32 %v813, %v815
    %v820 = vadd.s32 %v816, 1
    %v821 = vsel %vm819, %v820, %v816
    %v822 = vadd.s32 %v817, %v821
    %v823 = vadd.s32 %v822, 536870912
    %v824 = vshrl.u32 %v823, 30
    %v825 = vshll.u32 %v824, 30
    %v826 = vsub.s32 %v822, %v825
    %vm827 = vcmp.lt.s32.totalorder %v826, 0
    %v828 = vsub.s32 0, %v826
    %v829 = vsel %vm827, %v828, %v826
    %v830 = vclz %v829
    %v831 = vsub.s32 %v830, 2
    %vm832 = vcmp.gt.s32.totalorder 0, %v831
    %v833 = vsel %vm832, 0, %v831
    %v834 = vsub.s32 32, %v833
    %v835 = vshll.u32 %v826, %v833
    %v836 = vshrl.u32 %v818, %v834
    %v837 = vor.u32 %v835, %v836
    %v838 = vsub.s32 4294967266, %v833
    %v839 = vadd.s32 %v838, 127
    %v840 = vshll.u32 %v839, 23
    %v841 = vor.u32 4788187, %v840
    %v842 = vand.u32 2147483647, %v841
    %v844 = vcvt.s32.f32 %v837
    %v845 = vmul.f32 %v844, %v842
    %v846 = vxor.u32 %v845, 2147483648
    %v847 = vsel %vm764, %v846, %v845
    %v848 = vsub.s32 4, %v824
    %v849 = vsel %vm764, %v848, %v824
    %v850 = vsel %vm763, %v656, %v847
    %v851 = vsel %vm763, 0, %v849
    %v852 = vcosq.f32.pop %v850
    %v853 = vsinq.f32.pop %v850
    %vm854 = vweird.f32 %v656
    %v855 = vand.u32 %v851, 3
    %vm856 = vcmp.lt.s32.totalorder %v855, 2
    %vm857 = vcmp.eq.s32.totalorder %v855, 0
    %v858 = vxor.u32 %v853, 2147483648
    %v859 = vsel %vm857, %v852, %v858
    %vm860 = vcmp.eq.s32.totalorder %v855, 2
    %v861 = vxor.u32 %v852, 2147483648
    %v862 = vsel %vm860, %v861, %v853
    %v863 = vsel %vm856, %v859, %v862
    %v864 = vsel %vm854, nan, %v863
    %865 = vst.msk [vmem:[#allocation5 + $0x18] sm:$0x7] %vm25, %v864
    // Predicated region
    $region10: #{tpu_custom_call.1} parent=1 // pred_check
      _
    $region11: #{tpu_custom_call.1} parent=1 // pred_check_branch
      %867 = sbr.rel (0) target = $region13
    $region12: #{tpu_custom_call.1} parent=1 // pred_region
      %s869 = ssub.s32 432, 432
      %870 = vsyncadd [#allocation4], %s869
      %s872 = sshll.u32 [#allocation5], 4
      %s873 = int_to_ptr.vmem [resolvable:$true] %s872
      %875 = dma.vmem_to_hbm [thread:$0]  %s873, 432, %s1, [#allocation4]
    $region13: #{tpu_custom_call.1} parent=1 // pred_fallthru
      _
    // Predicated region
    $region14: #{tpu_custom_call.1} parent=1 // pred_check
      _
    $region15: #{tpu_custom_call.1} parent=1 // pred_check_branch
      %877 = sbr.rel (0) target = $region17
    $region16: #{tpu_custom_call.1} parent=1 // pred_region
      %878 = dma.done [#allocation4], 432
    $region17: #{tpu_custom_call.1} parent=1 // pred_fallthru
      _
    %879 = vsyncpa [#allocation3], 1
    %880 = vsyncpa [#allocation4], 1

</llo_original>
